<compile_context>
chip_gen: v7x
topology: tpu7x:2x2x1
jax: 0.10.0
libtpu: 0.0.40
codegen_flags: <defaults>
</compile_context>

<pallas_src>
import jax
import jax.numpy as jnp
from jax.experimental import pallas as pl
from jax.experimental.pallas import tpu as pltpu


def _dma_copy_pair_kernel(u_in, i_in, u_out, i_out, u_sem, i_sem):
    """Copy both embedding tables HBM -> HBM with overlapped async DMAs."""
    cu = pltpu.make_async_copy(u_in, u_out, u_sem)
    ci = pltpu.make_async_copy(i_in, i_out, i_sem)
    cu.start()
    ci.start()
    cu.wait()
    ci.wait()


def _hbm_copy_pair(user_emb, item_emb):
    """Materialize copies of both tables via direct HBM->HBM DMA (one launch)."""
    return pl.pallas_call(
        _dma_copy_pair_kernel,
        out_shape=(
            jax.ShapeDtypeStruct(user_emb.shape, user_emb.dtype),
            jax.ShapeDtypeStruct(item_emb.shape, item_emb.dtype),
        ),
        in_specs=[
            pl.BlockSpec(memory_space=pl.ANY),
            pl.BlockSpec(memory_space=pl.ANY),
        ],
        out_specs=(
            pl.BlockSpec(memory_space=pl.ANY),
            pl.BlockSpec(memory_space=pl.ANY),
        ),
        scratch_shapes=[
            pltpu.SemaphoreType.DMA(()),
            pltpu.SemaphoreType.DMA(()),
        ],
    )(user_emb, item_emb)


def mf_forward(user_emb, item_emb, *, copy=True, min_pallas_bytes=4 * 1024 * 1024):
    """Pallas equivalent of MF.forward(adj) -> (user_weight, item_weight).

    copy=False : optimal — forward() is the identity, return the parameter
                 arrays directly (zero bytes moved).
    copy=True  : materialize fresh copies. Tables totalling >= min_pallas_bytes
                 go through the fused HBM->HBM DMA Pallas kernel; smaller tables
                 bypass Pallas (launch overhead would dominate) and let XLA copy.
                 Pass min_pallas_bytes=0 to force the Pallas kernel.
    """
    if not copy:
        return user_emb, item_emb

    total_bytes = (
        user_emb.size * jnp.dtype(user_emb.dtype).itemsize
        + item_emb.size * jnp.dtype(item_emb.dtype).itemsize
    )
    if total_bytes < min_pallas_bytes:
        # Tiny tables: a Pallas launch costs more than the copy itself.
        return jnp.copy(user_emb), jnp.copy(item_emb)

    return _hbm_copy_pair(user_emb, item_emb)


def xavier_uniform(key, shape, dtype=jnp.float32):
    # Matches torch.nn.init.xavier_uniform_ for a 2-D weight
    # (fan_in = shape[1], fan_out = shape[0]).
    # TODO(synk): not bit-for-bit identical to torch's RNG stream (different PRNG).
    fan_out, fan_in = shape
    bound = (6.0 / (fan_in + fan_out)) ** 0.5
    return jax.random.uniform(key, shape, dtype=dtype, minval=-bound, maxval=bound)


if __name__ == "__main__":
    # Small, forward-consistent shapes.
    n_users = 8
    n_items = 16
    embedding_dim = 32

    key = jax.random.PRNGKey(0)
    k_user, k_item = jax.random.split(key)

    # Deterministic parameter init (synthetic; mirrors nn.init.xavier_uniform_).
    user_embedding_weight = xavier_uniform(k_user, (n_users, embedding_dim))
    item_embedding_weight = xavier_uniform(k_item, (n_items, embedding_dim))

    # `adj` is unused by MF.forward; constructed only for interface parity.
    adj = jnp.zeros((n_users, n_items), dtype=jnp.float32)  # unused

    # Pallas HBM->HBM DMA copy path (force the kernel even at demo sizes).
    user_out, item_out = mf_forward(
        user_embedding_weight, item_embedding_weight, copy=True, min_pallas_bytes=0
    )
    jax.block_until_ready((user_out, item_out))

    # Zero-copy fast path (optimal: no bytes moved).
    user_fast, item_fast = mf_forward(
        user_embedding_weight, item_embedding_weight, copy=False
    )

    assert user_out.shape == (n_users, embedding_dim)
    assert item_out.shape == (n_items, embedding_dim)
    assert jnp.allclose(user_out, user_embedding_weight)
    assert jnp.allclose(item_out, item_embedding_weight)
    assert jnp.allclose(user_fast, user_embedding_weight)
    assert jnp.allclose(item_fast, item_embedding_weight)

    print("KERNEL_OK")
</pallas_src>

<mosaic_0001>
module attributes {stable_mosaic.version = 11 : i64} {
  func.func @_dma_copy_pair_kernel(%arg0: memref<8x32xf32, #tpu.memory_space<any>>, %arg1: memref<16x32xf32, #tpu.memory_space<any>>, %arg2: memref<8x32xf32, #tpu.memory_space<any>>, %arg3: memref<16x32xf32, #tpu.memory_space<any>>, %arg4: memref<!tpu.dma_semaphore, #tpu.memory_space<semaphore_mem>>, %arg5: memref<!tpu.dma_semaphore, #tpu.memory_space<semaphore_mem>>) attributes {dimension_semantics = [], scalar_prefetch = 0 : i64, scratch_operands = 2 : i64, tpu.core_type = #tpu.core_type<tc>} {
    tpu.enqueue_dma source(%arg0 : memref<8x32xf32, #tpu.memory_space<any>>) target(%arg2 : memref<8x32xf32, #tpu.memory_space<any>>) target_semaphore(%arg4 : memref<!tpu.dma_semaphore, #tpu.memory_space<semaphore_mem>>)
    tpu.enqueue_dma source(%arg1 : memref<16x32xf32, #tpu.memory_space<any>>) target(%arg3 : memref<16x32xf32, #tpu.memory_space<any>>) target_semaphore(%arg5 : memref<!tpu.dma_semaphore, #tpu.memory_space<semaphore_mem>>)
    tpu.wait_dma2 semaphore(%arg4 : memref<!tpu.dma_semaphore, #tpu.memory_space<semaphore_mem>>) src(%arg0 : memref<8x32xf32, #tpu.memory_space<any>>) dst(%arg2 : memref<8x32xf32, #tpu.memory_space<any>>)
    tpu.wait_dma2 semaphore(%arg5 : memref<!tpu.dma_semaphore, #tpu.memory_space<semaphore_mem>>) src(%arg1 : memref<16x32xf32, #tpu.memory_space<any>>) dst(%arg3 : memref<16x32xf32, #tpu.memory_space<any>>)
    return
  }
}

</mosaic_0001>

<llo_original>
// kernel: tpu_custom_call.1
$region0: #{tpu_custom_call.1}
  #allocation0 [shape = 'u32[]', space=smem, size = 0x4, offset = 0x4, fixed_abs, tag = 'smem constant byte address 0x4 - core index']
  #allocation1 [shape = 'u32[144,128]{1,0:T(1,128)}', space=vmem, size = 0x12000, scoped, tag = 'internal scratch']
  #allocation2 [shape = 's32[1]{0}', space=sflag, size = 0x4, scoped, tag = 'scratch operand']
  #allocation3 [shape = 's32[1]{0}', space=sflag, size = 0x4, scoped, tag = 'scratch operand']
  #allocation4 [shape = 's32[]', space=sflag, size = 0x4, offset = 0, fixed_abs, tag = 'sflag constant byte address 0x0 - dummy sync flag']
  #allocation5 [shape = 'u32[0]{0}', space=smem, size = 0, offset = 0, fixed_abs, tag = 'smem constant byte address 0x0 - null']
  #allocation6 [shape = 's32[]', space=sflag, size = 0x4, offset = 0, fixed_abs, tag = 'sflag constant byte address 0x0 - dummy sync flag']
  #allocation7 [shape = 'u32[0]{0}', space=smem, size = 0, offset = 0, fixed_abs, tag = 'smem constant byte address 0x0 - null']
  %s0 = inlined_call_operand.hbm [shape: f32[8,32], index: 0, kind: input, shape index: {}]
  %s1 = inlined_call_operand.hbm [shape: f32[16,32], index: 1, kind: input, shape index: {}]
  %s2 = inlined_call_operand.hbm [shape: f32[8,32], index: 2, kind: output, shape index: {0}]
  %s3 = inlined_call_operand.hbm [shape: f32[16,32], index: 3, kind: output, shape index: {1}]
  %4 = xla_tuple %s2, %s3
  %s5 = sld [smem:[#allocation0]]
  $region2: #{tpu_custom_call.1} parent=0
    _
  %s7 = ssub.s32 1, %s5
  %s8 = scalar_select 0, %s7, %s5
  %s10 = sshll.u32 1, 14
  %s11 = sxor.u32 4294967295, %s10
  %s14 = sshll.u32 3, 24
  %s15 = sxor.u32 4294967295, %s14
  %s16 = sand.u32 0, %s15
  %s18 = sor.u32 %s16, 0
  %21 = dma.general %s0, 128, %s2, [#allocation2], [#allocation4], [#allocation5], %s18, 0
  %s23 = sshll.u32 1, 14
  %s24 = sxor.u32 4294967295, %s23
  %s27 = sshll.u32 3, 24
  %s28 = sxor.u32 4294967295, %s27
  %s29 = sand.u32 0, %s28
  %s31 = sor.u32 %s29, 0
  %34 = dma.general %s1, 256, %s3, [#allocation3], [#allocation6], [#allocation7], %s31, 0
  %s35 = smul.u32 8, 1
  %s36 = sshll.u32 %s35, 4
  %37 = dma.done [#allocation2], %s36
  %s38 = smul.u32 16, 1
  %s39 = sshll.u32 %s38, 4
  %40 = dma.done [#allocation3], %s39
  %41 = vsyncmov [#allocation2]
  %s42 = vpop.sfrf %41
  %p43 = scmp.eq.s32.totalorder %s42, 0
  %p44 = pneg %p43
  %46 = shalt.err (%p44)
  %47 = vsyncmov [#allocation3]
  %s48 = vpop.sfrf %47
  %p49 = scmp.eq.s32.totalorder %s48, 0
  %p50 = pneg %p49
  %52 = shalt.err (%p50)

</llo_original>
